<compile_context>
chip_gen: v5e
topology: v5e:2x2
jax: 0.10.0
libtpu: 0.0.40
codegen_flags: <defaults>
</compile_context>

<pallas_src>
import functools
import math

import jax
import jax.numpy as jnp
from jax import lax
from jax.experimental import pallas as pl
from jax.experimental.pallas import tpu as pltpu


def _round_up(n, m):
    return ((n + m - 1) // m) * m


def vanilla_rnn_kernel(xp_ref, whh_ref, wph_ref, bp_ref, out_ref, h_ref,
                       *, block_t, unroll):
    """One (batch tile, time tile) step of the recurrence.

    xp_ref:  (block_t, Bb, Hp) f32   input projection x_t @ W_hx + b_h (lane-padded)
    whh_ref: (Hp, Hp)          bf16
    wph_ref: (Hp, Cp)          bf16
    bp_ref:  (1, Cp)           f32
    out_ref: (Bb, Cp)          f32
    h_ref:   (Bb, Hp)          f32   VMEM scratch, carried across time tiles
    """
    t_idx = pl.program_id(1)

    @pl.when(t_idx == 0)
    def _():
        h_ref[...] = jnp.zeros_like(h_ref)       # h_init = zeros(num_hidden)

    W_hh = whh_ref[...]                          # bf16, loop-invariant in this tile

    def step(t, h):
        x_t = xp_ref[t]                          # (Bb, Hp) f32, already includes b_h
        hh = jnp.dot(h.astype(jnp.bfloat16), W_hh,
                     preferred_element_type=jnp.float32)   # MXU bf16 -> f32 acc
        return jnp.tanh(x_t + hh)                # elementwise in f32

    h_ref[...] = lax.fori_loop(0, block_t, step, h_ref[...], unroll=unroll)

    @pl.when(t_idx == pl.num_programs(1) - 1)
    def _():
        # Lane-dense (Bb, Cp) store; padded lanes stay exactly zero (+ b_p pad = 0).
        out_ref[...] = (
            jnp.dot(h_ref[...].astype(jnp.bfloat16), wph_ref[...],
                    preferred_element_type=jnp.float32)
            + bp_ref[...]
        )


def vanilla_rnn_forward(x, params, *, seq_length, input_dim, num_classes):
    """JAX wrapper reproducing VanillaRNN.forward semantics."""
    W_hx, W_hh, W_ph, b_h, b_p = params
    num_hidden = W_hh.shape[0]
    Hp = _round_up(num_hidden, 128)
    Cp = _round_up(num_classes, 128)

    f32, bf16 = jnp.float32, jnp.bfloat16

    # Zero-pad to lane-dense shapes; padded hidden lanes stay 0 through tanh(0)=0.
    W_hx_p = jnp.zeros((W_hx.shape[0], Hp), f32).at[:, :num_hidden].set(W_hx.astype(f32))
    W_hh_p = jnp.zeros((Hp, Hp), bf16).at[:num_hidden, :num_hidden].set(W_hh.astype(bf16))
    W_ph_p = jnp.zeros((Hp, Cp), bf16).at[:num_hidden, :num_classes].set(W_ph.astype(bf16))
    b_h_p = jnp.zeros((1, Hp), f32).at[0, :num_hidden].set(b_h.astype(f32))
    b_p_p = jnp.zeros((1, Cp), f32).at[0, :num_classes].set(b_p.astype(f32))

    x = x[:, :seq_length]
    if input_dim == num_classes:
        # PyTorch: x = F.one_hot(x.long()).float(); x[:, t] @ W_hx.
        # one_hot @ W_hx == row gather -> skip one-hot and the matmul entirely.
        x_proj = jnp.take(W_hx_p, x.astype(jnp.int32), axis=0)        # (B, T, Hp)
    else:
        # PyTorch: x = x[:, :, None]; x[:, t] @ W_hx  (scalar-input path).
        xf = x[:, :, None].astype(f32)                                 # (B, T, D)
        x_proj = jnp.einsum("btd,dh->bth", xf, W_hx_p)                 # (B, T, Hp)

    # Fold b_h once in the wrapper (saves one VPU add per recurrent step).
    x_proj = x_proj + b_h_p                                            # (B, T, Hp)
    x_proj = jnp.transpose(x_proj, (1, 0, 2))                          # (T, B, Hp)

    B = x_proj.shape[1]
    block_b = B if B <= 128 else 128

    # Time tile: largest that keeps one x-projection buffer ~<= 4 MiB.
    step_bytes = block_b * Hp * 4
    block_t = max(1, min(seq_length, (4 * 1024 * 1024) // step_bytes))
    num_t = (seq_length + block_t - 1) // block_t
    T_pad = num_t * block_t
    if T_pad > seq_length:
        # Left-pad with zero rows: tanh(0 + 0 @ W_hh) = 0 keeps h at h_init
        # through the padded prefix, so padded steps are exact no-ops.
        pad = jnp.zeros((T_pad - seq_length, B, Hp), f32)
        x_proj = jnp.concatenate([pad, x_proj], axis=0)

    grid = (pl.cdiv(B, block_b), num_t)

    kernel = functools.partial(
        vanilla_rnn_kernel,
        block_t=block_t,
        unroll=True if block_t <= 16 else 8,
    )

    out_padded = pl.pallas_call(
        kernel,
        out_shape=jax.ShapeDtypeStruct((B, Cp), f32),
        grid=grid,
        in_specs=[
            pl.BlockSpec((block_t, block_b, Hp), lambda i, t: (t, i, 0)),
            pl.BlockSpec((Hp, Hp), lambda i, t: (0, 0)),
            pl.BlockSpec((Hp, Cp), lambda i, t: (0, 0)),
            pl.BlockSpec((1, Cp), lambda i, t: (0, 0)),
        ],
        out_specs=pl.BlockSpec((block_b, Cp), lambda i, t: (i, 0)),
        scratch_shapes=[pltpu.VMEM((block_b, Hp), f32)],
        compiler_params=pltpu.CompilerParams(
            # batch tiles -> megacore on v7x; time is a sequential carry axis.
            dimension_semantics=("parallel", "arbitrary"),
        ),
    )(x_proj, W_hh_p, W_ph_p, b_p_p)

    return out_padded[:, :num_classes]


def xavier_uniform(key, shape):
    """Matches torch.nn.init.xavier_uniform_ for 2-D weights."""
    fan_in, fan_out = shape
    bound = math.sqrt(6.0 / (fan_in + fan_out))
    return jax.random.uniform(key, shape, jnp.float32, -bound, bound)


def init_params(key, input_dim, num_hidden, num_classes):
    k1, k2, k3 = jax.random.split(key, 3)
    W_hx = xavier_uniform(k1, (input_dim, num_hidden))
    W_hh = xavier_uniform(k2, (num_hidden, num_hidden))
    W_ph = xavier_uniform(k3, (num_hidden, num_classes))
    b_h = jnp.zeros((num_hidden,), jnp.float32)
    b_p = jnp.zeros((num_classes,), jnp.float32)
    return (W_hx, W_hh, W_ph, b_h, b_p)


def reference_forward(x, params, *, seq_length, input_dim, num_classes,
                      bf16_matmul=False):
    """Pure-JAX reference of the PyTorch forward (optionally bf16-matched)."""
    W_hx, W_hh, W_ph, b_h, b_p = params
    if input_dim == num_classes:
        xf = jax.nn.one_hot(x.astype(jnp.int32), input_dim, dtype=jnp.float32)
    else:
        xf = x[:, :, None].astype(jnp.float32)
    x_proj = jnp.einsum("btd,dh->bth", xf, W_hx.astype(jnp.float32))

    if bf16_matmul:
        W_hh_m, W_ph_m = W_hh.astype(jnp.bfloat16), W_ph.astype(jnp.bfloat16)
        cast = lambda h: h.astype(jnp.bfloat16)
    else:
        W_hh_m, W_ph_m = W_hh.astype(jnp.float32), W_ph.astype(jnp.float32)
        cast = lambda h: h

    h = jnp.zeros((xf.shape[0], W_hh.shape[0]), jnp.float32)
    for t in range(seq_length):
        hh = jnp.dot(cast(h), W_hh_m, preferred_element_type=jnp.float32)
        h = jnp.tanh(x_proj[:, t] + hh + b_h)
    return jnp.dot(cast(h), W_ph_m, preferred_element_type=jnp.float32) + b_p


if __name__ == "__main__":
    # Small shapes consistent with the module (palindrome-digit style task):
    # one-hot branch is taken since input_dim == num_classes.
    batch = 2
    seq_length = 8
    input_dim = 10
    num_hidden = 32
    num_classes = 10

    key = jax.random.PRNGKey(0)
    k_params, k_x = jax.random.split(key)
    params = init_params(k_params, input_dim, num_hidden, num_classes)

    # Integer digit sequences; force the max digit to appear so F.one_hot's
    # inferred num_classes equals input_dim (exact semantic match).
    x = jax.random.randint(k_x, (batch, seq_length), 0, num_classes, dtype=jnp.int32)
    x = x.at[0, 0].set(num_classes - 1)

    out = vanilla_rnn_forward(
        x, params, seq_length=seq_length, input_dim=input_dim, num_classes=num_classes
    )
    out = jax.block_until_ready(out)
    assert out.shape == (batch, num_classes)

    # 1) Numerics-matched reference (same bf16-operand / f32-accumulate recipe).
    ref_matched = reference_forward(
        x, params, seq_length=seq_length, input_dim=input_dim,
        num_classes=num_classes, bf16_matmul=True)
    assert jnp.allclose(out, ref_matched, atol=2e-3, rtol=2e-3), (
        float(jnp.max(jnp.abs(out - ref_matched))))

    # 2) Full-f32 module semantics; bf16 matmul operands add only a small error.
    ref_f32 = reference_forward(
        x, params, seq_length=seq_length, input_dim=input_dim,
        num_classes=num_classes, bf16_matmul=False)
    assert jnp.allclose(out, ref_f32, atol=1e-1, rtol=1e-1), (
        float(jnp.max(jnp.abs(out - ref_f32))))

    print("KERNEL_OK")
</pallas_src>

<mosaic_0001>
module attributes {stable_mosaic.version = 11 : i64} {
  func.func @vanilla_rnn_kernel(%arg0: i32, %arg1: i32, %arg2: memref<8x2x128xf32, #tpu.memory_space<vmem>>, %arg3: memref<128x128xbf16, #tpu.memory_space<vmem>>, %arg4: memref<128x128xbf16, #tpu.memory_space<vmem>>, %arg5: memref<1x128xf32, #tpu.memory_space<vmem>>, %arg6: memref<2x128xf32, #tpu.memory_space<vmem>>, %arg7: memref<2x128xf32, #tpu.memory_space<vmem>>) attributes {dimension_semantics = [#tpu.dimension_semantics<parallel>, #tpu.dimension_semantics<arbitrary>], iteration_bounds = array<i64: 1, 1>, scalar_prefetch = 0 : i64, scratch_operands = 1 : i64, tpu.core_type = #tpu.core_type<tc>, window_params = [{transform_indices = @transform_0, window_bounds = array<i64: 8, 2, 128>}, {pipeline_mode = #tpu.pipeline_mode<synchronous>, transform_indices = @transform_1, window_bounds = array<i64: 128, 128>}, {pipeline_mode = #tpu.pipeline_mode<synchronous>, transform_indices = @transform_2, window_bounds = array<i64: 128, 128>}, {pipeline_mode = #tpu.pipeline_mode<synchronous>, transform_indices = @transform_3, window_bounds = array<i64: 1, 128>}, {transform_indices = @transform_4, window_bounds = array<i64: 2, 128>}]} {
    %c0_i32 = arith.constant 0 : i32
    %0 = arith.cmpi eq, %arg1, %c0_i32 : i32
    %1 = arith.extui %0 : i1 to i32
    %c0_i32_0 = arith.constant 0 : i32
    %2 = arith.cmpi ne, %1, %c0_i32_0 : i32
    scf.if %2 {
      %cst_32 = arith.constant 0.000000e+00 : f32
      %65 = vector.broadcast %cst_32 : f32 to vector<2x128xf32>
      %c0_33 = arith.constant 0 : index
      %c0_34 = arith.constant 0 : index
      %66 = vector.load %arg7[%c0_33, %c0_34] : memref<2x128xf32, #tpu.memory_space<vmem>>, vector<2x128xf32>
      tpu.vector_store %arg7[%c0_33, %c0_34], %65 {strides = array<i32>} : memref<2x128xf32, #tpu.memory_space<vmem>>, vector<2x128xf32>,
    } else {
    }
    %c0 = arith.constant 0 : index
    %c0_1 = arith.constant 0 : index
    %3 = vector.load %arg3[%c0, %c0_1] : memref<128x128xbf16, #tpu.memory_space<vmem>>, vector<128x128xbf16>
    %c0_2 = arith.constant 0 : index
    %c0_3 = arith.constant 0 : index
    %4 = vector.load %arg7[%c0_2, %c0_3] : memref<2x128xf32, #tpu.memory_space<vmem>>, vector<2x128xf32>
    %c0_i32_4 = arith.constant 0 : i32
    %5 = arith.index_cast %c0_i32_4 : i32 to index
    %c0_5 = arith.constant 0 : index
    %c0_6 = arith.constant 0 : index
    %6 = vector.load %arg2[%5, %c0_5, %c0_6] : memref<8x2x128xf32, #tpu.memory_space<vmem>>, vector<1x2x128xf32>
    %7 = vector.shape_cast %6 : vector<1x2x128xf32> to vector<2x128xf32>
    %8 = arith.truncf %4 : vector<2x128xf32> to vector<2x128xbf16>
    %cst = arith.constant dense<0.000000e+00> : vector<2x128xf32>
    %9 = tpu.matmul %8, %3, %cst {dimension_numbers = #tpu.dot_dimension_numbers<[1], [0], [0], [1], [0, 0, 1, 1], [], []>} : vector<2x128xbf16>, vector<128x128xbf16>, vector<2x128xf32> -> vector<2x128xf32>
    %10 = arith.addf %7, %9 : vector<2x128xf32>
    %11 = math.tanh %10 : vector<2x128xf32>
    %c1_i32 = arith.constant 1 : i32
    %12 = arith.index_cast %c1_i32 : i32 to index
    %c0_7 = arith.constant 0 : index
    %c0_8 = arith.constant 0 : index
    %13 = vector.load %arg2[%12, %c0_7, %c0_8] : memref<8x2x128xf32, #tpu.memory_space<vmem>>, vector<1x2x128xf32>
    %14 = vector.shape_cast %13 : vector<1x2x128xf32> to vector<2x128xf32>
    %15 = arith.truncf %11 : vector<2x128xf32> to vector<2x128xbf16>
    %cst_9 = arith.constant dense<0.000000e+00> : vector<2x128xf32>
    %16 = tpu.matmul %15, %3, %cst_9 {dimension_numbers = #tpu.dot_dimension_numbers<[1], [0], [0], [1], [0, 0, 1, 1], [], []>} : vector<2x128xbf16>, vector<128x128xbf16>, vector<2x128xf32> -> vector<2x128xf32>
    %17 = arith.addf %14, %16 : vector<2x128xf32>
    %18 = math.tanh %17 : vector<2x128xf32>
    %c2_i32 = arith.constant 2 : i32
    %19 = arith.index_cast %c2_i32 : i32 to index
    %c0_10 = arith.constant 0 : index
    %c0_11 = arith.constant 0 : index
    %20 = vector.load %arg2[%19, %c0_10, %c0_11] : memref<8x2x128xf32, #tpu.memory_space<vmem>>, vector<1x2x128xf32>
    %21 = vector.shape_cast %20 : vector<1x2x128xf32> to vector<2x128xf32>
    %22 = arith.truncf %18 : vector<2x128xf32> to vector<2x128xbf16>
    %cst_12 = arith.constant dense<0.000000e+00> : vector<2x128xf32>
    %23 = tpu.matmul %22, %3, %cst_12 {dimension_numbers = #tpu.dot_dimension_numbers<[1], [0], [0], [1], [0, 0, 1, 1], [], []>} : vector<2x128xbf16>, vector<128x128xbf16>, vector<2x128xf32> -> vector<2x128xf32>
    %24 = arith.addf %21, %23 : vector<2x128xf32>
    %25 = math.tanh %24 : vector<2x128xf32>
    %c3_i32 = arith.constant 3 : i32
    %26 = arith.index_cast %c3_i32 : i32 to index
    %c0_13 = arith.constant 0 : index
    %c0_14 = arith.constant 0 : index
    %27 = vector.load %arg2[%26, %c0_13, %c0_14] : memref<8x2x128xf32, #tpu.memory_space<vmem>>, vector<1x2x128xf32>
    %28 = vector.shape_cast %27 : vector<1x2x128xf32> to vector<2x128xf32>
    %29 = arith.truncf %25 : vector<2x128xf32> to vector<2x128xbf16>
    %cst_15 = arith.constant dense<0.000000e+00> : vector<2x128xf32>
    %30 = tpu.matmul %29, %3, %cst_15 {dimension_numbers = #tpu.dot_dimension_numbers<[1], [0], [0], [1], [0, 0, 1, 1], [], []>} : vector<2x128xbf16>, vector<128x128xbf16>, vector<2x128xf32> -> vector<2x128xf32>
    %31 = arith.addf %28, %30 : vector<2x128xf32>
    %32 = math.tanh %31 : vector<2x128xf32>
    %c4_i32 = arith.constant 4 : i32
    %33 = arith.index_cast %c4_i32 : i32 to index
    %c0_16 = arith.constant 0 : index
    %c0_17 = arith.constant 0 : index
    %34 = vector.load %arg2[%33, %c0_16, %c0_17] : memref<8x2x128xf32, #tpu.memory_space<vmem>>, vector<1x2x128xf32>
    %35 = vector.shape_cast %34 : vector<1x2x128xf32> to vector<2x128xf32>
    %36 = arith.truncf %32 : vector<2x128xf32> to vector<2x128xbf16>
    %cst_18 = arith.constant dense<0.000000e+00> : vector<2x128xf32>
    %37 = tpu.matmul %36, %3, %cst_18 {dimension_numbers = #tpu.dot_dimension_numbers<[1], [0], [0], [1], [0, 0, 1, 1], [], []>} : vector<2x128xbf16>, vector<128x128xbf16>, vector<2x128xf32> -> vector<2x128xf32>
    %38 = arith.addf %35, %37 : vector<2x128xf32>
    %39 = math.tanh %38 : vector<2x128xf32>
    %c5_i32 = arith.constant 5 : i32
    %40 = arith.index_cast %c5_i32 : i32 to index
    %c0_19 = arith.constant 0 : index
    %c0_20 = arith.constant 0 : index
    %41 = vector.load %arg2[%40, %c0_19, %c0_20] : memref<8x2x128xf32, #tpu.memory_space<vmem>>, vector<1x2x128xf32>
    %42 = vector.shape_cast %41 : vector<1x2x128xf32> to vector<2x128xf32>
    %43 = arith.truncf %39 : vector<2x128xf32> to vector<2x128xbf16>
    %cst_21 = arith.constant dense<0.000000e+00> : vector<2x128xf32>
    %44 = tpu.matmul %43, %3, %cst_21 {dimension_numbers = #tpu.dot_dimension_numbers<[1], [0], [0], [1], [0, 0, 1, 1], [], []>} : vector<2x128xbf16>, vector<128x128xbf16>, vector<2x128xf32> -> vector<2x128xf32>
    %45 = arith.addf %42, %44 : vector<2x128xf32>
    %46 = math.tanh %45 : vector<2x128xf32>
    %c6_i32 = arith.constant 6 : i32
    %47 = arith.index_cast %c6_i32 : i32 to index
    %c0_22 = arith.constant 0 : index
    %c0_23 = arith.constant 0 : index
    %48 = vector.load %arg2[%47, %c0_22, %c0_23] : memref<8x2x128xf32, #tpu.memory_space<vmem>>, vector<1x2x128xf32>
    %49 = vector.shape_cast %48 : vector<1x2x128xf32> to vector<2x128xf32>
    %50 = arith.truncf %46 : vector<2x128xf32> to vector<2x128xbf16>
    %cst_24 = arith.constant dense<0.000000e+00> : vector<2x128xf32>
    %51 = tpu.matmul %50, %3, %cst_24 {dimension_numbers = #tpu.dot_dimension_numbers<[1], [0], [0], [1], [0, 0, 1, 1], [], []>} : vector<2x128xbf16>, vector<128x128xbf16>, vector<2x128xf32> -> vector<2x128xf32>
    %52 = arith.addf %49, %51 : vector<2x128xf32>
    %53 = math.tanh %52 : vector<2x128xf32>
    %c7_i32 = arith.constant 7 : i32
    %54 = arith.index_cast %c7_i32 : i32 to index
    %c0_25 = arith.constant 0 : index
    %c0_26 = arith.constant 0 : index
    %55 = vector.load %arg2[%54, %c0_25, %c0_26] : memref<8x2x128xf32, #tpu.memory_space<vmem>>, vector<1x2x128xf32>
    %56 = vector.shape_cast %55 : vector<1x2x128xf32> to vector<2x128xf32>
    %57 = arith.truncf %53 : vector<2x128xf32> to vector<2x128xbf16>
    %cst_27 = arith.constant dense<0.000000e+00> : vector<2x128xf32>
    %58 = tpu.matmul %57, %3, %cst_27 {dimension_numbers = #tpu.dot_dimension_numbers<[1], [0], [0], [1], [0, 0, 1, 1], [], []>} : vector<2x128xbf16>, vector<128x128xbf16>, vector<2x128xf32> -> vector<2x128xf32>
    %59 = arith.addf %56, %58 : vector<2x128xf32>
    %60 = math.tanh %59 : vector<2x128xf32>
    %c8_i32 = arith.constant 8 : i32
    %c0_28 = arith.constant 0 : index
    %c0_29 = arith.constant 0 : index
    %61 = vector.load %arg7[%c0_28, %c0_29] : memref<2x128xf32, #tpu.memory_space<vmem>>, vector<2x128xf32>
    tpu.vector_store %arg7[%c0_28, %c0_29], %60 {strides = array<i32>} : memref<2x128xf32, #tpu.memory_space<vmem>>, vector<2x128xf32>,
    %c0_i32_30 = arith.constant 0 : i32
    %62 = arith.cmpi eq, %arg1, %c0_i32_30 : i32
    %63 = arith.extui %62 : i1 to i32
    %c0_i32_31 = arith.constant 0 : i32
    %64 = arith.cmpi ne, %63, %c0_i32_31 : i32
    scf.if %64 {
      %c0_32 = arith.constant 0 : index
      %c0_33 = arith.constant 0 : index
      %65 = vector.load %arg7[%c0_32, %c0_33] : memref<2x128xf32, #tpu.memory_space<vmem>>, vector<2x128xf32>
      %66 = arith.truncf %65 : vector<2x128xf32> to vector<2x128xbf16>
      %c0_34 = arith.constant 0 : index
      %c0_35 = arith.constant 0 : index
      %67 = vector.load %arg4[%c0_34, %c0_35] : memref<128x128xbf16, #tpu.memory_space<vmem>>, vector<128x128xbf16>
      %cst_36 = arith.constant dense<0.000000e+00> : vector<2x128xf32>
      %68 = tpu.matmul %66, %67, %cst_36 {dimension_numbers = #tpu.dot_dimension_numbers<[1], [0], [0], [1], [0, 0, 1, 1], [], []>} : vector<2x128xbf16>, vector<128x128xbf16>, vector<2x128xf32> -> vector<2x128xf32>
      %c0_37 = arith.constant 0 : index
      %c0_38 = arith.constant 0 : index
      %69 = vector.load %arg5[%c0_37, %c0_38] : memref<1x128xf32, #tpu.memory_space<vmem>>, vector<1x128xf32>
      %70 = vector.broadcast %69 : vector<1x128xf32> to vector<2x128xf32>
      %71 = arith.addf %68, %70 : vector<2x128xf32>
      %c0_39 = arith.constant 0 : index
      %c0_40 = arith.constant 0 : index
      %72 = vector.load %arg6[%c0_39, %c0_40] : memref<2x128xf32, #tpu.memory_space<vmem>>, vector<2x128xf32>
      tpu.vector_store %arg6[%c0_39, %c0_40], %71 {strides = array<i32>} : memref<2x128xf32, #tpu.memory_space<vmem>>, vector<2x128xf32>,
    } else {
    }
    return
  }
  func.func @transform_0(%arg0: i32, %arg1: i32) -> (i32, i32, i32) {
    %c0_i32 = arith.constant 0 : i32
    %c0_i32_0 = arith.constant 0 : i32
    return %arg1, %arg0, %c0_i32 : i32, i32, i32
  }
  func.func @transform_1(%arg0: i32, %arg1: i32) -> (i32, i32) {
    %c0_i32 = arith.constant 0 : i32
    %c0_i32_0 = arith.constant 0 : i32
    %c0_i32_1 = arith.constant 0 : i32
    return %c0_i32, %c0_i32_0 : i32, i32
  }
  func.func @transform_2(%arg0: i32, %arg1: i32) -> (i32, i32) {
    %c0_i32 = arith.constant 0 : i32
    %c0_i32_0 = arith.constant 0 : i32
    %c0_i32_1 = arith.constant 0 : i32
    return %c0_i32, %c0_i32_0 : i32, i32
  }
  func.func @transform_3(%arg0: i32, %arg1: i32) -> (i32, i32) {
    %c0_i32 = arith.constant 0 : i32
    %c0_i32_0 = arith.constant 0 : i32
    %c0_i32_1 = arith.constant 0 : i32
    return %c0_i32, %c0_i32_0 : i32, i32
  }
  func.func @transform_4(%arg0: i32, %arg1: i32) -> (i32, i32) {
    %c0_i32 = arith.constant 0 : i32
    %c0_i32_0 = arith.constant 0 : i32
    return %arg0, %c0_i32 : i32, i32
  }
}

</mosaic_0001>

<llo_original>
// kernel: tpu_custom_call.1
$region0: #{tpu_custom_call.1}
  #allocation0 [shape = 'u32[]', space=smem, size = 0x4, offset = 0x4, fixed_abs, tag = 'smem constant byte address 0x4 - core index']
  #allocation1 [shape = 'u32[72,128]{1,0:T(1,128)}', space=vmem, size = 0x9000, scoped, tag = 'internal scratch']
  #allocation2 [shape = 'f32[2,128]{1,0:T(2,128)}', space=vmem, size = 0x400, scoped, tag = 'scratch operand']
  %s0 = inlined_call_operand.hbm [shape: f32[8,2,128], index: 0, kind: input, shape index: {}]
  %s1 = inlined_call_operand.hbm [shape: bf16[128,128], index: 1, kind: input, shape index: {}]
  %s2 = inlined_call_operand.hbm [shape: bf16[128,128], index: 2, kind: input, shape index: {}]
  %s3 = inlined_call_operand.vmem [shape: f32[1,128], index: 3, kind: input, shape index: {}]
  %s4 = inlined_call_operand.hbm [shape: f32[2,128], index: 4, kind: output, shape index: {}]
  %s5 = sld [smem:[#allocation0]]
  $region46: #{tpu_custom_call.1} parent=0
    _
  %s7 = ssub.s32 1, %s5
  %s8 = scalar_select 0, %s7, %s5
  $region1: #{tpu_custom_call.1} parent=0
    #allocation3 [shape = 'u8[8192]{0}', space=vmem, size = 0x2000, scoped, tag = 'input window, operand 0, single buffered']
    #allocation4 [shape = 's32[1]{0}', space=sflag, size = 0x4, scoped, tag = 'scoped memory for tpu_custom_call.1']
    #allocation5 [shape = 's32[1]{0}', space=sflag, size = 0x4, scoped, tag = 'scoped memory for tpu_custom_call.1']
    #allocation6 [shape = 'u8[32768]{0}', space=vmem, size = 0x8000, scoped, tag = 'input window, operand 1, single buffered']
    #allocation7 [shape = 's32[1]{0}', space=sflag, size = 0x4, scoped, tag = 'scoped memory for tpu_custom_call.1']
    #allocation8 [shape = 'u8[32768]{0}', space=vmem, size = 0x8000, scoped, tag = 'input window, operand 2, single buffered']
    #allocation9 [shape = 'u8[1024]{0}', space=vmem, size = 0x400, scoped, tag = 'output window, operand 0, single buffered']
    %9 = vsyncpa [#allocation4], 0
    %10 = vsyncpa [#allocation7], 0
    %11 = vsyncpa [#allocation5], 0
    // Predicated region
    $region2: #{tpu_custom_call.1} parent=1 // pred_check
      _
    $region3: #{tpu_custom_call.1} parent=1 // pred_check_branch
      %13 = sbr.rel (0) target = $region5
    $region4: #{tpu_custom_call.1} parent=1 // pred_region
      %15 = vsyncadd [#allocation4], 0
      %s16 = sshll.u32 %s0, 4
      %s17 = int_to_ptr.hbm [resolvable:$true] %s16
      %s18 = sshll.u32 [#allocation3], 4
      %s19 = int_to_ptr.vmem [resolvable:$true] %s18
      %24 = dma.hbm_to_vmem [thread:$0]  %s17, 256, %s19, [#allocation4], 32, 32, 2
    $region5: #{tpu_custom_call.1} parent=1 // pred_fallthru
      _
    // Predicated region
    $region6: #{tpu_custom_call.1} parent=1 // pred_check
      _
    $region7: #{tpu_custom_call.1} parent=1 // pred_check_branch
      %26 = sbr.rel (0) target = $region9
    $region8: #{tpu_custom_call.1} parent=1 // pred_region
      %28 = vsyncadd [#allocation7], 0
      %s29 = sshll.u32 %s1, 4
      %s30 = int_to_ptr.hbm [resolvable:$true] %s29
      %s31 = sshll.u32 [#allocation6], 4
      %s32 = int_to_ptr.vmem [resolvable:$true] %s31
      %37 = dma.hbm_to_vmem [thread:$0]  %s30, 1024, %s32, [#allocation7], 64, 64, 4
    $region9: #{tpu_custom_call.1} parent=1 // pred_fallthru
      _
    // Predicated region
    $region10: #{tpu_custom_call.1} parent=1 // pred_check
      _
    $region11: #{tpu_custom_call.1} parent=1 // pred_check_branch
      %39 = sbr.rel (0) target = $region13
    $region12: #{tpu_custom_call.1} parent=1 // pred_region
      %41 = vsyncadd [#allocation7], 0
      %s42 = sshll.u32 %s2, 4
      %s43 = int_to_ptr.hbm [resolvable:$true] %s42
      %s44 = sshll.u32 [#allocation8], 4
      %s45 = int_to_ptr.vmem [resolvable:$true] %s44
      %50 = dma.hbm_to_vmem [thread:$0]  %s43, 1024, %s45, [#allocation7], 64, 64, 4
    $region13: #{tpu_custom_call.1} parent=1 // pred_fallthru
      _
    // Predicated region
    $region14: #{tpu_custom_call.1} parent=1 // pred_check
      _
    $region15: #{tpu_custom_call.1} parent=1 // pred_check_branch
      %52 = sbr.rel (0) target = $region17
    $region16: #{tpu_custom_call.1} parent=1 // pred_region
      _
    $region17: #{tpu_custom_call.1} parent=1 // pred_fallthru
      _
    // Predicated region
    $region18: #{tpu_custom_call.1} parent=1 // pred_check
      _
    $region19: #{tpu_custom_call.1} parent=1 // pred_check_branch
      %54 = sbr.rel (0) target = $region21
    $region20: #{tpu_custom_call.1} parent=1 // pred_region
      %56 = dma.done [#allocation4], 256
    $region21: #{tpu_custom_call.1} parent=1 // pred_fallthru
      _
    // Predicated region
    $region22: #{tpu_custom_call.1} parent=1 // pred_check
      _
    $region23: #{tpu_custom_call.1} parent=1 // pred_check_branch
      %58 = sbr.rel (0) target = $region25
    $region24: #{tpu_custom_call.1} parent=1 // pred_region
      %60 = dma.done [#allocation7], 1024
    $region25: #{tpu_custom_call.1} parent=1 // pred_fallthru
      _
    // Predicated region
    $region26: #{tpu_custom_call.1} parent=1 // pred_check
      _
    $region27: #{tpu_custom_call.1} parent=1 // pred_check_branch
      %62 = sbr.rel (0) target = $region29
    $region28: #{tpu_custom_call.1} parent=1 // pred_region
      %64 = dma.done [#allocation7], 1024
    $region29: #{tpu_custom_call.1} parent=1 // pred_fallthru
      _
    %p65 = scmp.eq.s32.totalorder 0, 0
    // Predicated region
    $region30: #{tpu_custom_call.1} parent=1 // pred_check
      %p66 = pneg %p65
    $region31: #{tpu_custom_call.1} parent=1 // pred_check_branch
      %68 = sbr.rel (%p66) target = $region33
    $region32: #{tpu_custom_call.1} parent=1 // pred_region
      %69 = vst [vmem:[#allocation2] sm:$0x3] 0.0
    $region33: #{tpu_custom_call.1} parent=1 // pred_fallthru
      _
    %v70 = vld [vmem:[#allocation6] sm:$0xf]
    %v71 = vld [vmem:[#allocation6 + $0x4] sm:$0xf]
    %v72 = vld [vmem:[#allocation6 + $0x8] sm:$0xf]
    %v73 = vld [vmem:[#allocation6 + $0xc] sm:$0xf]
    %v74 = vld [vmem:[#allocation6 + $0x10] sm:$0xf]
    %v75 = vld [vmem:[#allocation6 + $0x14] sm:$0xf]
    %v76 = vld [vmem:[#allocation6 + $0x18] sm:$0xf]
    %v77 = vld [vmem:[#allocation6 + $0x1c] sm:$0xf]
    %v78 = vld [vmem:[#allocation6 + $0x20] sm:$0xf]
    %v79 = vld [vmem:[#allocation6 + $0x24] sm:$0xf]
    %v80 = vld [vmem:[#allocation6 + $0x28] sm:$0xf]
    %v81 = vld [vmem:[#allocation6 + $0x2c] sm:$0xf]
    %v82 = vld [vmem:[#allocation6 + $0x30] sm:$0xf]
    %v83 = vld [vmem:[#allocation6 + $0x34] sm:$0xf]
    %v84 = vld [vmem:[#allocation6 + $0x38] sm:$0xf]
    %v85 = vld [vmem:[#allocation6 + $0x3c] sm:$0xf]
    %v86 = vld [vmem:[#allocation2] sm:$0x3]
    %v87 = vld [vmem:[#allocation3] sm:$0x3]
    %v88 = vpack.c.bf16 %v86, %v86
    %v105 = vunpack.c.l.b16 %v70
    %v106 = vunpack.c.l.b16 %v71
    %v107 = vunpack.c.l.b16 %v72
    %v108 = vunpack.c.l.b16 %v73
    %v109 = vunpack.c.l.b16 %v74
    %v110 = vunpack.c.l.b16 %v75
    %v111 = vunpack.c.l.b16 %v76
    %v112 = vunpack.c.l.b16 %v77
    %v113 = vunpack.c.l.b16 %v78
    %v114 = vunpack.c.l.b16 %v79
    %v115 = vunpack.c.l.b16 %v80
    %v116 = vunpack.c.l.b16 %v81
    %v117 = vunpack.c.l.b16 %v82
    %v118 = vunpack.c.l.b16 %v83
    %v119 = vunpack.c.l.b16 %v84
    %v120 = vunpack.c.l.b16 %v85
    %v121 = vpack.c.b16 %v106, %v105
    %v122 = vpack.c.b16 %v108, %v107
    %v123 = vpack.c.b16 %v110, %v109
    %v124 = vpack.c.b16 %v112, %v111
    %v125 = vpack.c.b16 %v114, %v113
    %v126 = vpack.c.b16 %v116, %v115
    %v127 = vpack.c.b16 %v118, %v117
    %v128 = vpack.c.b16 %v120, %v119
    %137 = vmatpush.bf16.msra.mxu0 %v128
    %138 = vmatpush.bf16.msra.mxu0 %v127
    %139 = vmatpush.bf16.msra.mxu0 %v126
    %140 = vmatpush.bf16.msra.mxu0 %v125
    %141 = vmatpush.bf16.msra.mxu0 %v124
    %142 = vmatpush.bf16.msra.mxu0 %v123
    %143 = vmatpush.bf16.msra.mxu0 %v122
    %144 = vmatpush.bf16.msra.mxu0 %v121
    %145 = vmatmul.bf16.gmra.mxu0 %v88
    %v146 = vpop.f32.mrf.mxu0
    %v147 = vadd.f32 0.0, %v146
    %v148 = vpop.f32.mrf.mxu0
    %149 = vdwg.mxu0
    %v150 = vadd.f32 %v87, %v147
    %v151 = vtanh.pop %v150
    %s152 = scalar_lea.vmem [#allocation3], 2
    %v153 = vld [vmem:[%s152] sm:$0x3]
    %v154 = vpack.c.bf16 %v151, %v151
    %155 = vmatpush.bf16.msra.mxu0 %v128
    %156 = vmatpush.bf16.msra.mxu0 %v127
    %157 = vmatpush.bf16.msra.mxu0 %v126
    %158 = vmatpush.bf16.msra.mxu0 %v125
    %159 = vmatpush.bf16.msra.mxu0 %v124
    %160 = vmatpush.bf16.msra.mxu0 %v123
    %161 = vmatpush.bf16.msra.mxu0 %v122
    %162 = vmatpush.bf16.msra.mxu0 %v121
    %163 = vmatmul.bf16.gmra.mxu0 %v154
    %v164 = vpop.f32.mrf.mxu0
    %v165 = vadd.f32 0.0, %v164
    %v166 = vpop.f32.mrf.mxu0
    %167 = vdwg.mxu0
    %v168 = vadd.f32 %v153, %v165
    %v169 = vtanh.pop %v168
    %s170 = scalar_lea.vmem [#allocation3], 4
    %v171 = vld [vmem:[%s170] sm:$0x3]
    %v172 = vpack.c.bf16 %v169, %v169
    %173 = vmatpush.bf16.msra.mxu0 %v128
    %174 = vmatpush.bf16.msra.mxu0 %v127
    %175 = vmatpush.bf16.msra.mxu0 %v126
    %176 = vmatpush.bf16.msra.mxu0 %v125
    %177 = vmatpush.bf16.msra.mxu0 %v124
    %178 = vmatpush.bf16.msra.mxu0 %v123
    %179 = vmatpush.bf16.msra.mxu0 %v122
    %180 = vmatpush.bf16.msra.mxu0 %v121
    %181 = vmatmul.bf16.gmra.mxu0 %v172
    %v182 = vpop.f32.mrf.mxu0
    %v183 = vadd.f32 0.0, %v182
    %v184 = vpop.f32.mrf.mxu0
    %185 = vdwg.mxu0
    %v186 = vadd.f32 %v171, %v183
    %v187 = vtanh.pop %v186
    %s188 = scalar_lea.vmem [#allocation3], 6
    %v189 = vld [vmem:[%s188] sm:$0x3]
    %v190 = vpack.c.bf16 %v187, %v187
    %191 = vmatpush.bf16.msra.mxu0 %v128
    %192 = vmatpush.bf16.msra.mxu0 %v127
    %193 = vmatpush.bf16.msra.mxu0 %v126
    %194 = vmatpush.bf16.msra.mxu0 %v125
    %195 = vmatpush.bf16.msra.mxu0 %v124
    %196 = vmatpush.bf16.msra.mxu0 %v123
    %197 = vmatpush.bf16.msra.mxu0 %v122
    %198 = vmatpush.bf16.msra.mxu0 %v121
    %199 = vmatmul.bf16.gmra.mxu0 %v190
    %v200 = vpop.f32.mrf.mxu0
    %v201 = vadd.f32 0.0, %v200
    %v202 = vpop.f32.mrf.mxu0
    %203 = vdwg.mxu0
    %v204 = vadd.f32 %v189, %v201
    %v205 = vtanh.pop %v204
    %s206 = scalar_lea.vmem [#allocation3], 8
    %v207 = vld [vmem:[%s206] sm:$0x3]
    %v208 = vpack.c.bf16 %v205, %v205
    %209 = vmatpush.bf16.msra.mxu0 %v128
    %210 = vmatpush.bf16.msra.mxu0 %v127
    %211 = vmatpush.bf16.msra.mxu0 %v126
    %212 = vmatpush.bf16.msra.mxu0 %v125
    %213 = vmatpush.bf16.msra.mxu0 %v124
    %214 = vmatpush.bf16.msra.mxu0 %v123
    %215 = vmatpush.bf16.msra.mxu0 %v122
    %216 = vmatpush.bf16.msra.mxu0 %v121
    %217 = vmatmul.bf16.gmra.mxu0 %v208
    %v218 = vpop.f32.mrf.mxu0
    %v219 = vadd.f32 0.0, %v218
    %v220 = vpop.f32.mrf.mxu0
    %221 = vdwg.mxu0
    %v222 = vadd.f32 %v207, %v219
    %v223 = vtanh.pop %v222
    %s224 = scalar_lea.vmem [#allocation3], 10
    %v225 = vld [vmem:[%s224] sm:$0x3]
    %v226 = vpack.c.bf16 %v223, %v223
    %227 = vmatpush.bf16.msra.mxu0 %v128
    %228 = vmatpush.bf16.msra.mxu0 %v127
    %229 = vmatpush.bf16.msra.mxu0 %v126
    %230 = vmatpush.bf16.msra.mxu0 %v125
    %231 = vmatpush.bf16.msra.mxu0 %v124
    %232 = vmatpush.bf16.msra.mxu0 %v123
    %233 = vmatpush.bf16.msra.mxu0 %v122
    %234 = vmatpush.bf16.msra.mxu0 %v121
    %235 = vmatmul.bf16.gmra.mxu0 %v226
    %v236 = vpop.f32.mrf.mxu0
    %v237 = vadd.f32 0.0, %v236
    %v238 = vpop.f32.mrf.mxu0
    %239 = vdwg.mxu0
    %v240 = vadd.f32 %v225, %v237
    %v241 = vtanh.pop %v240
    %s242 = scalar_lea.vmem [#allocation3], 12
    %v243 = vld [vmem:[%s242] sm:$0x3]
    %v244 = vpack.c.bf16 %v241, %v241
    %245 = vmatpush.bf16.msra.mxu0 %v128
    %246 = vmatpush.bf16.msra.mxu0 %v127
    %247 = vmatpush.bf16.msra.mxu0 %v126
    %248 = vmatpush.bf16.msra.mxu0 %v125
    %249 = vmatpush.bf16.msra.mxu0 %v124
    %250 = vmatpush.bf16.msra.mxu0 %v123
    %251 = vmatpush.bf16.msra.mxu0 %v122
    %252 = vmatpush.bf16.msra.mxu0 %v121
    %253 = vmatmul.bf16.gmra.mxu0 %v244
    %v254 = vpop.f32.mrf.mxu0
    %v255 = vadd.f32 0.0, %v254
    %v256 = vpop.f32.mrf.mxu0
    %257 = vdwg.mxu0
    %v258 = vadd.f32 %v243, %v255
    %v259 = vtanh.pop %v258
    %s260 = scalar_lea.vmem [#allocation3], 14
    %v261 = vld [vmem:[%s260] sm:$0x3]
    %v262 = vpack.c.bf16 %v259, %v259
    %263 = vmatpush.bf16.msra.mxu0 %v128
    %264 = vmatpush.bf16.msra.mxu0 %v127
    %265 = vmatpush.bf16.msra.mxu0 %v126
    %266 = vmatpush.bf16.msra.mxu0 %v125
    %267 = vmatpush.bf16.msra.mxu0 %v124
    %268 = vmatpush.bf16.msra.mxu0 %v123
    %269 = vmatpush.bf16.msra.mxu0 %v122
    %270 = vmatpush.bf16.msra.mxu0 %v121
    %271 = vmatmul.bf16.gmra.mxu0 %v262
    %v272 = vpop.f32.mrf.mxu0
    %v273 = vadd.f32 0.0, %v272
    %v274 = vpop.f32.mrf.mxu0
    %275 = vdwg.mxu0
    %v276 = vadd.f32 %v261, %v273
    %v277 = vtanh.pop %v276
    %278 = vst [vmem:[#allocation2] sm:$0x3] %v277
    // Predicated region
    $region34: #{tpu_custom_call.1} parent=1 // pred_check
      %p279 = pneg %p65
    $region35: #{tpu_custom_call.1} parent=1 // pred_check_branch
      %281 = sbr.rel (%p279) target = $region37
    $region36: #{tpu_custom_call.1} parent=1 // pred_region
      %v282 = vld [vmem:[#allocation2] sm:$0x3]
      %v283 = vpack.c.bf16 %v282, %v282
      %v284 = vld [vmem:[#allocation8] sm:$0xf]
      %v285 = vld [vmem:[#allocation8 + $0x4] sm:$0xf]
      %v286 = vld [vmem:[#allocation8 + $0x8] sm:$0xf]
      %v287 = vld [vmem:[#allocation8 + $0xc] sm:$0xf]
      %v288 = vld [vmem:[#allocation8 + $0x10] sm:$0xf]
      %v289 = vld [vmem:[#allocation8 + $0x14] sm:$0xf]
      %v290 = vld [vmem:[#allocation8 + $0x18] sm:$0xf]
      %v291 = vld [vmem:[#allocation8 + $0x1c] sm:$0xf]
      %v292 = vld [vmem:[#allocation8 + $0x20] sm:$0xf]
      %v293 = vld [vmem:[#allocation8 + $0x24] sm:$0xf]
      %v294 = vld [vmem:[#allocation8 + $0x28] sm:$0xf]
      %v295 = vld [vmem:[#allocation8 + $0x2c] sm:$0xf]
      %v296 = vld [vmem:[#allocation8 + $0x30] sm:$0xf]
      %v297 = vld [vmem:[#allocation8 + $0x34] sm:$0xf]
      %v298 = vld [vmem:[#allocation8 + $0x38] sm:$0xf]
      %v299 = vld [vmem:[#allocation8 + $0x3c] sm:$0xf]
      %v300 = vld [vmem:[%s3] sm:$0x1]
      %v302 = vperm.slane %v300, 0
      %v320 = vunpack.c.l.b16 %v284
      %v321 = vunpack.c.l.b16 %v285
      %v322 = vunpack.c.l.b16 %v286
      %v323 = vunpack.c.l.b16 %v287
      %v324 = vunpack.c.l.b16 %v288
      %v325 = vunpack.c.l.b16 %v289
      %v326 = vunpack.c.l.b16 %v290
      %v327 = vunpack.c.l.b16 %v291
      %v328 = vunpack.c.l.b16 %v292
      %v329 = vunpack.c.l.b16 %v293
      %v330 = vunpack.c.l.b16 %v294
      %v331 = vunpack.c.l.b16 %v295
      %v332 = vunpack.c.l.b16 %v296
      %v333 = vunpack.c.l.b16 %v297
      %v334 = vunpack.c.l.b16 %v298
      %v335 = vunpack.c.l.b16 %v299
      %v336 = vpack.c.b16 %v321, %v320
      %v337 = vpack.c.b16 %v323, %v322
      %v338 = vpack.c.b16 %v325, %v324
      %v339 = vpack.c.b16 %v327, %v326
      %v340 = vpack.c.b16 %v329, %v328
      %v341 = vpack.c.b16 %v331, %v330
      %v342 = vpack.c.b16 %v333, %v332
      %v343 = vpack.c.b16 %v335, %v334
      %352 = vmatpush.bf16.msra.mxu0 %v343
      %353 = vmatpush.bf16.msra.mxu0 %v342
      %354 = vmatpush.bf16.msra.mxu0 %v341
      %355 = vmatpush.bf16.msra.mxu0 %v340
      %356 = vmatpush.bf16.msra.mxu0 %v339
      %357 = vmatpush.bf16.msra.mxu0 %v338
      %358 = vmatpush.bf16.msra.mxu0 %v337
      %359 = vmatpush.bf16.msra.mxu0 %v336
      %360 = vmatmul.bf16.gmra.mxu0 %v283
      %v361 = vpop.f32.mrf.mxu0
      %v362 = vadd.f32 %v302, %v361
      %v363 = vpop.f32.mrf.mxu0
      %364 = vdwg.mxu0
      %365 = vst [vmem:[#allocation9] sm:$0x3] %v362
    $region37: #{tpu_custom_call.1} parent=1 // pred_fallthru
      _
    // Predicated region
    $region38: #{tpu_custom_call.1} parent=1 // pred_check
      _
    $region39: #{tpu_custom_call.1} parent=1 // pred_check_branch
      %367 = sbr.rel (0) target = $region41
    $region40: #{tpu_custom_call.1} parent=1 // pred_region
      %369 = vsyncadd [#allocation5], 0
      %s371 = sshll.u32 [#allocation9], 4
      %s372 = int_to_ptr.vmem [resolvable:$true] %s371
      %s373 = sshll.u32 %s4, 4
      %s374 = int_to_ptr.hbm [resolvable:$true] %s373
      %376 = dma.vmem_to_hbm [thread:$0]  %s372, 32, %s374, [#allocation5]
    $region41: #{tpu_custom_call.1} parent=1 // pred_fallthru
      _
    // Predicated region
    $region42: #{tpu_custom_call.1} parent=1 // pred_check
      _
    $region43: #{tpu_custom_call.1} parent=1 // pred_check_branch
      %378 = sbr.rel (0) target = $region45
    $region44: #{tpu_custom_call.1} parent=1 // pred_region
      %380 = dma.done [#allocation5], 32
    $region45: #{tpu_custom_call.1} parent=1 // pred_fallthru
      _
    %381 = vsyncpa [#allocation4], 1
    %382 = vsyncpa [#allocation7], 1
    %383 = vsyncpa [#allocation5], 1

</llo_original>
